<compile_context>
chip_gen: v7x
topology: tpu7x:2x2x1
jax: 0.10.0
libtpu: 0.0.40
codegen_flags: <defaults>
</compile_context>

<pallas_src>
import functools

import jax
import jax.numpy as jnp
from jax.experimental import pallas as pl
from jax.experimental.pallas import tpu as pltpu


def resblock_kernel(x_ref, wdw_ref, wpw_ref, wrs_ref, brs_ref, out_ref, *, width):
    # x_ref  : (1, Cin, H*W)  input, spatial flattened (lane-dense)      (VMEM)
    # wdw_ref: (Cin, 9)       depthwise 3x3 weights, taps on last dim    (VMEM)
    # wpw_ref: (Cout, Cin)    pointwise 1x1 weights                      (VMEM)
    # wrs_ref: (Cout, Cin)    resample 1x1 weights                       (VMEM)
    # brs_ref: (Cout, 1)      resample bias                              (VMEM)
    # out_ref: (1, Cout, H*W)
    cin = x_ref.shape[1]
    hw = x_ref.shape[2]
    W = width

    x = x_ref[0, :, :]          # (Cin, HW) f32
    wdw = wdw_ref[...]          # (Cin, 9)

    # Column-index mask for the circular seam along W (flattened layout).
    lane = jax.lax.broadcasted_iota(jnp.int32, (cin, hw), 1)
    if (W & (W - 1)) == 0:
        w_idx = lane & (W - 1)
    else:
        w_idx = lane % W
    is_first_col = w_idx == 0
    is_last_col = w_idx == (W - 1)

    def circshift(a, s):
        # y[..., i] = a[..., (i + s) % hw]   (explicit, direction-unambiguous)
        s = s % hw
        if s == 0:
            return a
        return jnp.concatenate([a[:, s:], a[:, :s]], axis=-1)

    # Circular W-shifts (with seam fix, since a flat roll by +-1 would bleed
    # across rows) -- only 2 extra shifted copies + 2 selects.
    x_w = {
        0: x,
        1: jnp.where(is_last_col, circshift(x, 1 - W), circshift(x, 1)),
        -1: jnp.where(is_first_col, circshift(x, W - 1), circshift(x, -1)),
    }

    # Depthwise 3x3 circular conv: 9 vector MACs over the whole (Cin, HW) tile.
    # H-shifts are exact flat shifts by +-W (the H wrap coincides with the
    # flat wrap).  Weight tap t = kh*3 + kw with kh = dh+1, kw = dw+1.
    dw_acc = jnp.zeros((cin, hw), jnp.float32)
    for dh in (-1, 0, 1):
        for dwd in (-1, 0, 1):
            shifted = circshift(x_w[dwd], dh * W)
            t = (dh + 1) * 3 + (dwd + 1)
            dw_acc = dw_acc + wdw[:, t:t + 1] * shifted

    # Pointwise 1x1 and resample 1x1 as MXU matmuls over the channel dim.
    pw = jnp.dot(wpw_ref[...], dw_acc, preferred_element_type=jnp.float32)  # (Cout, HW)
    sc = jnp.dot(wrs_ref[...], x, preferred_element_type=jnp.float32)       # (Cout, HW)

    out = jnp.maximum(pw, 0.0) + sc + brs_ref[...]
    out_ref[0, :, :] = out.astype(out_ref.dtype)


def resblock_forward(x, w_dw, w_pw, w_rs, b_rs):
    """x: (N, Cin, H, W) f32.  Returns (N, Cout, H, W) f32."""
    N, Cin, H, W = x.shape
    Cout = w_pw.shape[0]
    HW = H * W

    # Lane-dense views (free reshapes in the XLA wrapper).
    x_flat = x.reshape(N, Cin, HW)
    w_dw_flat = w_dw.reshape(Cin, 9)
    b_rs_col = b_rs.reshape(Cout, 1)

    kernel = functools.partial(resblock_kernel, width=W)

    # TODO(synk): for large H*W / Cin, tile spatially (and bf16 the matmul
    # operands on v6e/v7x) so the double-buffered block fits v7x's 64 MiB VMEM.
    out_flat = pl.pallas_call(
        kernel,
        out_shape=jax.ShapeDtypeStruct((N, Cout, HW), x.dtype),
        grid=(N,),
        in_specs=[
            pl.BlockSpec((1, Cin, HW), lambda n: (n, 0, 0)),
            pl.BlockSpec((Cin, 9), lambda n: (0, 0)),
            pl.BlockSpec((Cout, Cin), lambda n: (0, 0)),
            pl.BlockSpec((Cout, Cin), lambda n: (0, 0)),
            pl.BlockSpec((Cout, 1), lambda n: (0, 0)),
        ],
        out_specs=pl.BlockSpec((1, Cout, HW), lambda n: (n, 0, 0)),
        compiler_params=pltpu.CompilerParams(dimension_semantics=("parallel",)),
    )(x_flat, w_dw_flat, w_pw, w_rs, b_rs_col)

    return out_flat.reshape(N, Cout, H, W)


def resblock_reference(x, w_dw, w_pw, w_rs, b_rs):
    """Pure-JAX reference for correctness checking."""
    N, Cin, H, W = x.shape
    xp = jnp.pad(x, ((0, 0), (0, 0), (1, 1), (1, 1)), mode="wrap")
    dw = jnp.zeros_like(x)
    for kh in range(3):
        for kw in range(3):
            dw = dw + w_dw[None, :, kh, kw, None, None] * xp[:, :, kh:kh + H, kw:kw + W]
    pw = jnp.einsum("oc,nchw->nohw", w_pw, dw)
    sc = jnp.einsum("oc,nchw->nohw", w_rs, x) + b_rs[None, :, None, None]
    return jnp.maximum(pw, 0.0) + sc


if __name__ == "__main__":
    N, Cin, Cout, H, W = 2, 4, 8, 16, 16

    key = jax.random.PRNGKey(0)
    kx, k1, k2, k3, k4 = jax.random.split(key, 5)

    x = jax.random.normal(kx, (N, Cin, H, W), jnp.float32)
    # Deterministic synthetic parameters (shapes match nn.Conv2d weights):
    w_dw = 0.2 * jax.random.normal(k1, (Cin, 3, 3), jnp.float32)    # depthwise (Cin,1,3,3) squeezed
    w_pw = 0.2 * jax.random.normal(k2, (Cout, Cin), jnp.float32)    # pointwise (Cout,Cin,1,1) squeezed
    w_rs = 0.2 * jax.random.normal(k3, (Cout, Cin), jnp.float32)    # resample  (Cout,Cin,1,1) squeezed
    b_rs = 0.1 * jax.random.normal(k4, (Cout,), jnp.float32)        # resample bias

    out = resblock_forward(x, w_dw, w_pw, w_rs, b_rs)
    out = jax.block_until_ready(out)

    ref = jax.block_until_ready(resblock_reference(x, w_dw, w_pw, w_rs, b_rs))
    assert out.shape == (N, Cout, H, W)
    if not jnp.allclose(out, ref, atol=1e-5, rtol=1e-5):
        raise AssertionError("Pallas ResBlock output does not match reference")

    print("KERNEL_OK")
</pallas_src>

<mosaic_0001>
module attributes {stable_mosaic.version = 11 : i64} {
  func.func @resblock_kernel(%arg0: i32, %arg1: memref<1x4x256xf32, #tpu.memory_space<vmem>>, %arg2: memref<4x9xf32, #tpu.memory_space<vmem>>, %arg3: memref<8x4xf32, #tpu.memory_space<vmem>>, %arg4: memref<8x4xf32, #tpu.memory_space<vmem>>, %arg5: memref<8x1xf32, #tpu.memory_space<vmem>>, %arg6: memref<1x8x256xf32, #tpu.memory_space<vmem>>) attributes {dimension_semantics = [#tpu.dimension_semantics<parallel>], iteration_bounds = array<i64: 2>, scalar_prefetch = 0 : i64, scratch_operands = 0 : i64, tpu.core_type = #tpu.core_type<tc>, window_params = [{transform_indices = @transform_0, window_bounds = array<i64: 1, 4, 256>}, {pipeline_mode = #tpu.pipeline_mode<synchronous>, transform_indices = @transform_1, window_bounds = array<i64: 4, 9>}, {pipeline_mode = #tpu.pipeline_mode<synchronous>, transform_indices = @transform_2, window_bounds = array<i64: 8, 4>}, {pipeline_mode = #tpu.pipeline_mode<synchronous>, transform_indices = @transform_3, window_bounds = array<i64: 8, 4>}, {pipeline_mode = #tpu.pipeline_mode<synchronous>, transform_indices = @transform_4, window_bounds = array<i64: 8, 1>}, {transform_indices = @transform_5, window_bounds = array<i64: 1, 8, 256>}]} {
    %c0 = arith.constant 0 : index
    %c0_0 = arith.constant 0 : index
    %c0_1 = arith.constant 0 : index
    %0 = vector.load %arg1[%c0, %c0_0, %c0_1] : memref<1x4x256xf32, #tpu.memory_space<vmem>>, vector<1x4x256xf32>
    %1 = vector.shape_cast %0 : vector<1x4x256xf32> to vector<4x256xf32>
    %c0_2 = arith.constant 0 : index
    %c0_3 = arith.constant 0 : index
    %2 = vector.load %arg2[%c0_2, %c0_3] : memref<4x9xf32, #tpu.memory_space<vmem>>, vector<4x9xf32>
    %3 = tpu.iota {dimensions = array<i32: 1>} : vector<4x256xi32>
    %c15_i32 = arith.constant 15 : i32
    %4 = vector.broadcast %c15_i32 : i32 to vector<4x256xi32>
    %5 = arith.andi %3, %4 : vector<4x256xi32>
    %c0_i32 = arith.constant 0 : i32
    %6 = vector.broadcast %c0_i32 : i32 to vector<4x256xi32>
    %7 = arith.cmpi eq, %5, %6 : vector<4x256xi32>
    %c15_i32_4 = arith.constant 15 : i32
    %8 = vector.broadcast %c15_i32_4 : i32 to vector<4x256xi32>
    %9 = arith.cmpi eq, %5, %8 : vector<4x256xi32>
    %10 = vector.extract_strided_slice %1 {offsets = [0, 241], sizes = [4, 15], strides = [1, 1]} : vector<4x256xf32> to vector<4x15xf32>
    %11 = vector.extract_strided_slice %1 {offsets = [0, 0], sizes = [4, 241], strides = [1, 1]} : vector<4x256xf32> to vector<4x241xf32>
    %12 = tpu.concatenate %10, %11 in 1 : vector<4x15xf32>, vector<4x241xf32> -> vector<4x256xf32>
    %13 = vector.extract_strided_slice %1 {offsets = [0, 1], sizes = [4, 255], strides = [1, 1]} : vector<4x256xf32> to vector<4x255xf32>
    %14 = vector.extract_strided_slice %1 {offsets = [0, 0], sizes = [4, 1], strides = [1, 1]} : vector<4x256xf32> to vector<4x1xf32>
    %15 = tpu.concatenate %13, %14 in 1 : vector<4x255xf32>, vector<4x1xf32> -> vector<4x256xf32>
    %16 = arith.select %9, %12, %15 : vector<4x256xi1>, vector<4x256xf32>
    %17 = vector.extract_strided_slice %1 {offsets = [0, 15], sizes = [4, 241], strides = [1, 1]} : vector<4x256xf32> to vector<4x241xf32>
    %18 = vector.extract_strided_slice %1 {offsets = [0, 0], sizes = [4, 15], strides = [1, 1]} : vector<4x256xf32> to vector<4x15xf32>
    %19 = tpu.concatenate %17, %18 in 1 : vector<4x241xf32>, vector<4x15xf32> -> vector<4x256xf32>
    %20 = vector.extract_strided_slice %1 {offsets = [0, 255], sizes = [4, 1], strides = [1, 1]} : vector<4x256xf32> to vector<4x1xf32>
    %21 = vector.extract_strided_slice %1 {offsets = [0, 0], sizes = [4, 255], strides = [1, 1]} : vector<4x256xf32> to vector<4x255xf32>
    %22 = tpu.concatenate %20, %21 in 1 : vector<4x1xf32>, vector<4x255xf32> -> vector<4x256xf32>
    %23 = arith.select %7, %19, %22 : vector<4x256xi1>, vector<4x256xf32>
    %cst = arith.constant 0.000000e+00 : f32
    %24 = vector.broadcast %cst : f32 to vector<4x256xf32>
    %25 = vector.extract_strided_slice %23 {offsets = [0, 240], sizes = [4, 16], strides = [1, 1]} : vector<4x256xf32> to vector<4x16xf32>
    %26 = vector.extract_strided_slice %23 {offsets = [0, 0], sizes = [4, 240], strides = [1, 1]} : vector<4x256xf32> to vector<4x240xf32>
    %27 = tpu.concatenate %25, %26 in 1 : vector<4x16xf32>, vector<4x240xf32> -> vector<4x256xf32>
    %28 = vector.extract_strided_slice %2 {offsets = [0, 0], sizes = [4, 1], strides = [1, 1]} : vector<4x9xf32> to vector<4x1xf32>
    %29 = vector.broadcast %28 : vector<4x1xf32> to vector<4x256xf32>
    %30 = arith.mulf %29, %27 : vector<4x256xf32>
    %31 = arith.addf %24, %30 : vector<4x256xf32>
    %32 = vector.extract_strided_slice %1 {offsets = [0, 240], sizes = [4, 16], strides = [1, 1]} : vector<4x256xf32> to vector<4x16xf32>
    %33 = vector.extract_strided_slice %1 {offsets = [0, 0], sizes = [4, 240], strides = [1, 1]} : vector<4x256xf32> to vector<4x240xf32>
    %34 = tpu.concatenate %32, %33 in 1 : vector<4x16xf32>, vector<4x240xf32> -> vector<4x256xf32>
    %35 = vector.extract_strided_slice %2 {offsets = [0, 1], sizes = [4, 1], strides = [1, 1]} : vector<4x9xf32> to vector<4x1xf32>
    %36 = vector.broadcast %35 : vector<4x1xf32> to vector<4x256xf32>
    %37 = arith.mulf %36, %34 : vector<4x256xf32>
    %38 = arith.addf %31, %37 : vector<4x256xf32>
    %39 = vector.extract_strided_slice %16 {offsets = [0, 240], sizes = [4, 16], strides = [1, 1]} : vector<4x256xf32> to vector<4x16xf32>
    %40 = vector.extract_strided_slice %16 {offsets = [0, 0], sizes = [4, 240], strides = [1, 1]} : vector<4x256xf32> to vector<4x240xf32>
    %41 = tpu.concatenate %39, %40 in 1 : vector<4x16xf32>, vector<4x240xf32> -> vector<4x256xf32>
    %42 = vector.extract_strided_slice %2 {offsets = [0, 2], sizes = [4, 1], strides = [1, 1]} : vector<4x9xf32> to vector<4x1xf32>
    %43 = vector.broadcast %42 : vector<4x1xf32> to vector<4x256xf32>
    %44 = arith.mulf %43, %41 : vector<4x256xf32>
    %45 = arith.addf %38, %44 : vector<4x256xf32>
    %46 = vector.extract_strided_slice %2 {offsets = [0, 3], sizes = [4, 1], strides = [1, 1]} : vector<4x9xf32> to vector<4x1xf32>
    %47 = vector.broadcast %46 : vector<4x1xf32> to vector<4x256xf32>
    %48 = arith.mulf %47, %23 : vector<4x256xf32>
    %49 = arith.addf %45, %48 : vector<4x256xf32>
    %50 = vector.extract_strided_slice %2 {offsets = [0, 4], sizes = [4, 1], strides = [1, 1]} : vector<4x9xf32> to vector<4x1xf32>
    %51 = vector.broadcast %50 : vector<4x1xf32> to vector<4x256xf32>
    %52 = arith.mulf %51, %1 : vector<4x256xf32>
    %53 = arith.addf %49, %52 : vector<4x256xf32>
    %54 = vector.extract_strided_slice %2 {offsets = [0, 5], sizes = [4, 1], strides = [1, 1]} : vector<4x9xf32> to vector<4x1xf32>
    %55 = vector.broadcast %54 : vector<4x1xf32> to vector<4x256xf32>
    %56 = arith.mulf %55, %16 : vector<4x256xf32>
    %57 = arith.addf %53, %56 : vector<4x256xf32>
    %58 = vector.extract_strided_slice %23 {offsets = [0, 16], sizes = [4, 240], strides = [1, 1]} : vector<4x256xf32> to vector<4x240xf32>
    %59 = vector.extract_strided_slice %23 {offsets = [0, 0], sizes = [4, 16], strides = [1, 1]} : vector<4x256xf32> to vector<4x16xf32>
    %60 = tpu.concatenate %58, %59 in 1 : vector<4x240xf32>, vector<4x16xf32> -> vector<4x256xf32>
    %61 = vector.extract_strided_slice %2 {offsets = [0, 6], sizes = [4, 1], strides = [1, 1]} : vector<4x9xf32> to vector<4x1xf32>
    %62 = vector.broadcast %61 : vector<4x1xf32> to vector<4x256xf32>
    %63 = arith.mulf %62, %60 : vector<4x256xf32>
    %64 = arith.addf %57, %63 : vector<4x256xf32>
    %65 = vector.extract_strided_slice %1 {offsets = [0, 16], sizes = [4, 240], strides = [1, 1]} : vector<4x256xf32> to vector<4x240xf32>
    %66 = vector.extract_strided_slice %1 {offsets = [0, 0], sizes = [4, 16], strides = [1, 1]} : vector<4x256xf32> to vector<4x16xf32>
    %67 = tpu.concatenate %65, %66 in 1 : vector<4x240xf32>, vector<4x16xf32> -> vector<4x256xf32>
    %68 = vector.extract_strided_slice %2 {offsets = [0, 7], sizes = [4, 1], strides = [1, 1]} : vector<4x9xf32> to vector<4x1xf32>
    %69 = vector.broadcast %68 : vector<4x1xf32> to vector<4x256xf32>
    %70 = arith.mulf %69, %67 : vector<4x256xf32>
    %71 = arith.addf %64, %70 : vector<4x256xf32>
    %72 = vector.extract_strided_slice %16 {offsets = [0, 16], sizes = [4, 240], strides = [1, 1]} : vector<4x256xf32> to vector<4x240xf32>
    %73 = vector.extract_strided_slice %16 {offsets = [0, 0], sizes = [4, 16], strides = [1, 1]} : vector<4x256xf32> to vector<4x16xf32>
    %74 = tpu.concatenate %72, %73 in 1 : vector<4x240xf32>, vector<4x16xf32> -> vector<4x256xf32>
    %75 = vector.extract_strided_slice %2 {offsets = [0, 8], sizes = [4, 1], strides = [1, 1]} : vector<4x9xf32> to vector<4x1xf32>
    %76 = vector.broadcast %75 : vector<4x1xf32> to vector<4x256xf32>
    %77 = arith.mulf %76, %74 : vector<4x256xf32>
    %78 = arith.addf %71, %77 : vector<4x256xf32>
    %c0_5 = arith.constant 0 : index
    %c0_6 = arith.constant 0 : index
    %79 = vector.load %arg3[%c0_5, %c0_6] : memref<8x4xf32, #tpu.memory_space<vmem>>, vector<8x4xf32>
    %cst_7 = arith.constant dense<0.000000e+00> : vector<8x256xf32>
    %80 = tpu.matmul %79, %78, %cst_7 {dimension_numbers = #tpu.dot_dimension_numbers<[1], [0], [0], [1], [0, 0, 1, 1], [], []>} : vector<8x4xf32>, vector<4x256xf32>, vector<8x256xf32> -> vector<8x256xf32>
    %c0_8 = arith.constant 0 : index
    %c0_9 = arith.constant 0 : index
    %81 = vector.load %arg4[%c0_8, %c0_9] : memref<8x4xf32, #tpu.memory_space<vmem>>, vector<8x4xf32>
    %cst_10 = arith.constant dense<0.000000e+00> : vector<8x256xf32>
    %82 = tpu.matmul %81, %1, %cst_10 {dimension_numbers = #tpu.dot_dimension_numbers<[1], [0], [0], [1], [0, 0, 1, 1], [], []>} : vector<8x4xf32>, vector<4x256xf32>, vector<8x256xf32> -> vector<8x256xf32>
    %cst_11 = arith.constant 0.000000e+00 : f32
    %83 = vector.broadcast %cst_11 : f32 to vector<8x256xf32>
    %84 = arith.maximumf %80, %83 : vector<8x256xf32>
    %85 = arith.addf %84, %82 : vector<8x256xf32>
    %c0_12 = arith.constant 0 : index
    %c0_13 = arith.constant 0 : index
    %86 = vector.load %arg5[%c0_12, %c0_13] : memref<8x1xf32, #tpu.memory_space<vmem>>, vector<8x1xf32>
    %87 = vector.broadcast %86 : vector<8x1xf32> to vector<8x256xf32>
    %88 = arith.addf %85, %87 : vector<8x256xf32>
    %c0_14 = arith.constant 0 : index
    %c0_15 = arith.constant 0 : index
    %c0_16 = arith.constant 0 : index
    %89 = vector.load %arg6[%c0_14, %c0_15, %c0_16] : memref<1x8x256xf32, #tpu.memory_space<vmem>>, vector<1x8x256xf32>
    %90 = vector.shape_cast %89 : vector<1x8x256xf32> to vector<8x256xf32>
    %91 = vector.shape_cast %88 : vector<8x256xf32> to vector<1x8x256xf32>
    tpu.vector_store %arg6[%c0_14, %c0_15, %c0_16], %91 {strides = array<i32>} : memref<1x8x256xf32, #tpu.memory_space<vmem>>, vector<1x8x256xf32>,
    return
  }
  func.func @transform_0(%arg0: i32) -> (i32, i32, i32) {
    %c0_i32 = arith.constant 0 : i32
    %c0_i32_0 = arith.constant 0 : i32
    %c0_i32_1 = arith.constant 0 : i32
    return %arg0, %c0_i32, %c0_i32_0 : i32, i32, i32
  }
  func.func @transform_1(%arg0: i32) -> (i32, i32) {
    %c0_i32 = arith.constant 0 : i32
    %c0_i32_0 = arith.constant 0 : i32
    %c0_i32_1 = arith.constant 0 : i32
    return %c0_i32, %c0_i32_0 : i32, i32
  }
  func.func @transform_2(%arg0: i32) -> (i32, i32) {
    %c0_i32 = arith.constant 0 : i32
    %c0_i32_0 = arith.constant 0 : i32
    %c0_i32_1 = arith.constant 0 : i32
    return %c0_i32, %c0_i32_0 : i32, i32
  }
  func.func @transform_3(%arg0: i32) -> (i32, i32) {
    %c0_i32 = arith.constant 0 : i32
    %c0_i32_0 = arith.constant 0 : i32
    %c0_i32_1 = arith.constant 0 : i32
    return %c0_i32, %c0_i32_0 : i32, i32
  }
  func.func @transform_4(%arg0: i32) -> (i32, i32) {
    %c0_i32 = arith.constant 0 : i32
    %c0_i32_0 = arith.constant 0 : i32
    %c0_i32_1 = arith.constant 0 : i32
    return %c0_i32, %c0_i32_0 : i32, i32
  }
  func.func @transform_5(%arg0: i32) -> (i32, i32, i32) {
    %c0_i32 = arith.constant 0 : i32
    %c0_i32_0 = arith.constant 0 : i32
    %c0_i32_1 = arith.constant 0 : i32
    return %arg0, %c0_i32, %c0_i32_0 : i32, i32, i32
  }
}

</mosaic_0001>

<llo_original>
// kernel: tpu_custom_call.1
$region0: #{tpu_custom_call.1}
  #allocation0 [shape = 'u32[]', space=smem, size = 0x4, offset = 0x4, fixed_abs, tag = 'smem constant byte address 0x4 - core index']
  #allocation1 [shape = 'u32[144,128]{1,0:T(1,128)}', space=vmem, size = 0x12000, scoped, tag = 'internal scratch']
  %s0 = inlined_call_operand.vmem [shape: f32[2,4,256], index: 0, kind: input, shape index: {}]
  %s1 = inlined_call_operand.vmem [shape: f32[4,9], index: 1, kind: input, shape index: {}]
  %s2 = inlined_call_operand.vmem [shape: f32[8,4], index: 2, kind: input, shape index: {}]
  %s3 = inlined_call_operand.vmem [shape: f32[8,4], index: 3, kind: input, shape index: {}]
  %s4 = inlined_call_operand.vmem [shape: f32[8,1], index: 4, kind: input, shape index: {}]
  %s5 = inlined_call_operand.hbm [shape: f32[2,8,256], index: 5, kind: output, shape index: {}]
  %s6 = sld [smem:[#allocation0]]
  $region53: #{tpu_custom_call.1} parent=0
    _
  %s8 = ssub.s32 1, %s6
  %s9 = scalar_select 0, %s8, %s6
  $region1: #{tpu_custom_call.1} parent=0
    #allocation2 [shape = 'u8[16384]{0}', space=vmem, size = 0x4000, scoped, tag = 'output window, operand 0']
    #allocation3 [shape = 's32[2]{0}', space=sflag, size = 0x8, scoped, tag = 'scoped memory for tpu_custom_call.1']
    %10 = vsyncpa [#allocation3], 0
    %s11 = scalar_lea.sflag [#allocation3], 1
    %12 = vsyncpa %s11, 0
    loop: start=0, step=1, limit=4
    $region2: #{tpu_custom_call.1} parent=1 // loop_pre_header
      _
    $region3: #{tpu_custom_call.1} parent=1 // loop_header
      %s14 = sphi 0, %s18
      %p15 = scmp.ge.s32.totalorder %s14, 4
      %s24 = sphi 0, %s26
      %s27 = sphi 0, %s24
      %s28 = sphi 0, %s27
      %s44 = sphi 0, %s28
      %s48 = sphi 0, %s48
      %s50 = sphi 0, %s48
      %s51 = sphi 0, %s50
      %s65 = sphi 0, %s51
      %s69 = sphi 0, %s69
      %s71 = sphi 0, %s69
      %s72 = sphi 0, %s71
      %s86 = sphi 0, %s72
      %s90 = sphi 0, %s90
      %s92 = sphi 0, %s90
      %s93 = sphi 0, %s92
      %s107 = sphi 0, %s93
      %s111 = sphi 0, %s111
      %s113 = sphi 0, %s111
      %s114 = sphi 0, %s113
      %s128 = sphi 0, %s114
      %s134 = sphi 0, %s136
      %s137 = sphi 0, %s134
      %s138 = sphi 0, %s137
      %s154 = sphi 0, %s138
    $region4: #{tpu_custom_call.1} parent=1 // loop_header_branch
      %17 = sbr.rel (%p15) target = $region8
    $region5: #{tpu_custom_call.1} parent=1 // loop_body
      %s19 = ssub.s32 %s14, 1
      %s20 = ssub.s32 %s14, 2
      %s21 = sadd.s32 %s14, 1
      %s22 = ssub.s32 %s14, %s21
      %p23 = scmp.eq.s32.totalorder %s22, 0
      %s25 = sadd.s32 %s24, 1
      %s26 = scalar_select %p23, %s24, %s25
      %p29 = pneg %p23
      %p30 = scmp.eq.s32.totalorder %s14, 1
      %p31 = por %p29, %p30
      %p32 = scmp.ne.s32.totalorder %s24, %s27
      %p33 = scmp.eq.s32.totalorder %s14, 0
      %p34 = por %p32, %p33
      %p35 = scmp.ne.s32.totalorder %s24, %s27
      %p36 = scmp.eq.s32.totalorder %s19, 1
      %p37 = por %p35, %p36
      %p38 = scmp.ne.s32.totalorder %s27, %s28
      %p39 = scmp.eq.s32.totalorder %s19, 0
      %p40 = por %p38, %p39
      %p41 = scmp.ne.s32.totalorder %s27, %s28
      %p42 = scmp.eq.s32.totalorder %s20, 1
      %p43 = por %p41, %p42
      %p45 = scmp.ne.s32.totalorder %s28, %s44
      %p46 = scmp.eq.s32.totalorder %s20, 0
      %p47 = por %p45, %p46
      %s49 = sadd.s32 %s48, 1
      %p52 = scmp.eq.s32.totalorder %s14, 1
      %p53 = scmp.ne.s32.totalorder %s48, %s50
      %p54 = scmp.eq.s32.totalorder %s14, 0
      %p55 = por %p53, %p54
      %p56 = scmp.ne.s32.totalorder %s48, %s50
      %p57 = scmp.eq.s32.totalorder %s19, 1
      %p58 = por %p56, %p57
      %p59 = scmp.ne.s32.totalorder %s50, %s51
      %p60 = scmp.eq.s32.totalorder %s19, 0
      %p61 = por %p59, %p60
      %p62 = scmp.ne.s32.totalorder %s50, %s51
      %p63 = scmp.eq.s32.totalorder %s20, 1
      %p64 = por %p62, %p63
      %p66 = scmp.ne.s32.totalorder %s51, %s65
      %p67 = scmp.eq.s32.totalorder %s20, 0
      %p68 = por %p66, %p67
      %s70 = sadd.s32 %s69, 1
      %p73 = scmp.eq.s32.totalorder %s14, 1
      %p74 = scmp.ne.s32.totalorder %s69, %s71
      %p75 = scmp.eq.s32.totalorder %s14, 0
      %p76 = por %p74, %p75
      %p77 = scmp.ne.s32.totalorder %s69, %s71
      %p78 = scmp.eq.s32.totalorder %s19, 1
      %p79 = por %p77, %p78
      %p80 = scmp.ne.s32.totalorder %s71, %s72
      %p81 = scmp.eq.s32.totalorder %s19, 0
      %p82 = por %p80, %p81
      %p83 = scmp.ne.s32.totalorder %s71, %s72
      %p84 = scmp.eq.s32.totalorder %s20, 1
      %p85 = por %p83, %p84
      %p87 = scmp.ne.s32.totalorder %s72, %s86
      %p88 = scmp.eq.s32.totalorder %s20, 0
      %p89 = por %p87, %p88
      %s91 = sadd.s32 %s90, 1
      %p94 = scmp.eq.s32.totalorder %s14, 1
      %p95 = scmp.ne.s32.totalorder %s90, %s92
      %p96 = scmp.eq.s32.totalorder %s14, 0
      %p97 = por %p95, %p96
      %p98 = scmp.ne.s32.totalorder %s90, %s92
      %p99 = scmp.eq.s32.totalorder %s19, 1
      %p100 = por %p98, %p99
      %p101 = scmp.ne.s32.totalorder %s92, %s93
      %p102 = scmp.eq.s32.totalorder %s19, 0
      %p103 = por %p101, %p102
      %p104 = scmp.ne.s32.totalorder %s92, %s93
      %p105 = scmp.eq.s32.totalorder %s20, 1
      %p106 = por %p104, %p105
      %p108 = scmp.ne.s32.totalorder %s93, %s107
      %p109 = scmp.eq.s32.totalorder %s20, 0
      %p110 = por %p108, %p109
      %s112 = sadd.s32 %s111, 1
      %p115 = scmp.eq.s32.totalorder %s14, 1
      %p116 = scmp.ne.s32.totalorder %s111, %s113
      %p117 = scmp.eq.s32.totalorder %s14, 0
      %p118 = por %p116, %p117
      %p119 = scmp.ne.s32.totalorder %s111, %s113
      %p120 = scmp.eq.s32.totalorder %s19, 1
      %p121 = por %p119, %p120
      %p122 = scmp.ne.s32.totalorder %s113, %s114
      %p123 = scmp.eq.s32.totalorder %s19, 0
      %p124 = por %p122, %p123
      %p125 = scmp.ne.s32.totalorder %s113, %s114
      %p126 = scmp.eq.s32.totalorder %s20, 1
      %p127 = por %p125, %p126
      %p129 = scmp.ne.s32.totalorder %s114, %s128
      %p130 = scmp.eq.s32.totalorder %s20, 0
      %p131 = por %p129, %p130
      %s132 = ssub.s32 %s14, %s21
      %p133 = scmp.eq.s32.totalorder %s132, 0
      %s135 = sadd.s32 %s134, 1
      %s136 = scalar_select %p133, %s134, %s135
      %p139 = pneg %p133
      %p140 = scmp.eq.s32.totalorder %s14, 1
      %p141 = por %p139, %p140
      %p142 = scmp.ne.s32.totalorder %s134, %s137
      %p143 = scmp.eq.s32.totalorder %s14, 0
      %p144 = por %p142, %p143
      %p145 = scmp.ne.s32.totalorder %s134, %s137
      %p146 = scmp.eq.s32.totalorder %s19, 1
      %p147 = por %p145, %p146
      %p148 = scmp.ne.s32.totalorder %s137, %s138
      %p149 = scmp.eq.s32.totalorder %s19, 0
      %p150 = por %p148, %p149
      %p151 = scmp.ne.s32.totalorder %s137, %s138
      %p152 = scmp.eq.s32.totalorder %s20, 1
      %p153 = por %p151, %p152
      %p155 = scmp.ne.s32.totalorder %s138, %s154
      %p156 = scmp.eq.s32.totalorder %s20, 0
      %p157 = por %p155, %p156
      %p158 = scmp.le.s32.totalorder 1, %s14
      %p159 = scmp.lt.s32.totalorder %s14, 3
      %p160 = pnand %p158, %p159
      %p161 = pneg %p160
      // Predicated region
      $region9: #{tpu_custom_call.1} parent=5 // pred_check
        _
      $region10: #{tpu_custom_call.1} parent=5 // pred_check_branch
        %163 = sbr.rel (%p160) target = $region12
      $region11: #{tpu_custom_call.1} parent=5 // pred_region
        %s164 = ssub.s32 %s14, 1
        // Predicated region
        $region13: #{tpu_custom_call.1} parent=11 // pred_check
          %p165 = pneg %p61
        $region14: #{tpu_custom_call.1} parent=11 // pred_check_branch
          %167 = sbr.rel (%p165) target = $region16
        $region15: #{tpu_custom_call.1} parent=11 // pred_region
          _
        $region16: #{tpu_custom_call.1} parent=11 // pred_fallthru
          _
        // Predicated region
        $region17: #{tpu_custom_call.1} parent=11 // pred_check
          %p168 = pneg %p82
        $region18: #{tpu_custom_call.1} parent=11 // pred_check_branch
          %170 = sbr.rel (%p168) target = $region20
        $region19: #{tpu_custom_call.1} parent=11 // pred_region
          _
        $region20: #{tpu_custom_call.1} parent=11 // pred_fallthru
          _
        // Predicated region
        $region21: #{tpu_custom_call.1} parent=11 // pred_check
          %p171 = pneg %p103
        $region22: #{tpu_custom_call.1} parent=11 // pred_check_branch
          %173 = sbr.rel (%p171) target = $region24
        $region23: #{tpu_custom_call.1} parent=11 // pred_region
          _
        $region24: #{tpu_custom_call.1} parent=11 // pred_fallthru
          _
        // Predicated region
        $region25: #{tpu_custom_call.1} parent=11 // pred_check
          %p174 = pneg %p124
        $region26: #{tpu_custom_call.1} parent=11 // pred_check_branch
          %176 = sbr.rel (%p174) target = $region28
        $region27: #{tpu_custom_call.1} parent=11 // pred_region
          _
        $region28: #{tpu_custom_call.1} parent=11 // pred_fallthru
          _
      $region12: #{tpu_custom_call.1} parent=5 // pred_fallthru
        _
      %p177 = scmp.lt.s32.totalorder %s14, 2
      // Predicated region
      $region29: #{tpu_custom_call.1} parent=5 // pred_check
        %p178 = pneg %p177
      $region30: #{tpu_custom_call.1} parent=5 // pred_check_branch
        %180 = sbr.rel (%p178) target = $region32
      $region31: #{tpu_custom_call.1} parent=5 // pred_region
        // Predicated region
        $region33: #{tpu_custom_call.1} parent=31 // pred_check
          %p181 = pneg %p34
        $region34: #{tpu_custom_call.1} parent=31 // pred_check_branch
          %183 = sbr.rel (%p181) target = $region36
        $region35: #{tpu_custom_call.1} parent=31 // pred_region
          %p184 = scmp.lt.s32.totalorder %s14, 1
          %s185 = scalar_select %p184, %s14, 1
          %s186 = smul.addr %s185, 2
          %s187 = smul.addr %s186, 4
          %s188 = scalar_lea.vmem %s0, %s187
        $region36: #{tpu_custom_call.1} parent=31 // pred_fallthru
          _
      $region32: #{tpu_custom_call.1} parent=5 // pred_fallthru
        _
      %p189 = scmp.le.s32.totalorder 1, %s14
      %p190 = scmp.lt.s32.totalorder %s14, 3
      %p191 = pnand %p189, %p190
      %p192 = pneg %p191
      // Predicated region
      $region37: #{tpu_custom_call.1} parent=5 // pred_check
        _
      $region38: #{tpu_custom_call.1} parent=5 // pred_check_branch
        %194 = sbr.rel (%p191) target = $region40
      $region39: #{tpu_custom_call.1} parent=5 // pred_region
        %s195 = ssub.s32 %s14, 1
        %p196 = scmp.lt.s32.totalorder %s19, 1
        %s197 = scalar_select %p196, %s19, 1
        %s198 = smul.addr %s197, 2
        %s199 = smul.addr %s198, 4
        %s200 = scalar_lea.vmem %s0, %s199
        %p201 = pneg %p40
        %p202 = pneg %p37
        %p203 = pneg %p61
        %p204 = pneg %p58
        %p205 = pneg %p82
        %p206 = pneg %p79
        %p207 = pneg %p103
        %p208 = pneg %p100
        %p209 = pneg %p124
        %p210 = pneg %p121
        %p211 = pneg %p150
        %p212 = pneg %p147
        %s213 = sand.u32 %s137, 1
        %s214 = scalar_lea.sflag [#allocation3], %s213
        %s215 = sand.u32 %s137, 1
        %s216 = smul.addr %s215, 16
        %s217 = scalar_lea.vmem [#allocation2], %s216
        %p218 = scmp.lt.s32.totalorder %s19, 1
        %s219 = scalar_select %p218, %s19, 1
        %s220 = smul.addr %s219, 2
        %s221 = smul.addr %s220, 4
        %s222 = scalar_lea.vmem %s0, %s221
        %v223 = vld [vmem:[%s222] sm:$0xff]
        %v224 = vld [vmem:[%s1] sm:$0xf]
        %v225 = vlaneseq
        %v226 = vand.u32 %v225, 127
        %v227 = vadd.s32 %v226, 128
        %v228 = vand.u32 %v226, 15
        %v229 = vand.u32 %v227, 15
        %vm230 = vcmp.eq.s32.totalorder %v228, 0
        %vm231 = vcmp.eq.s32.totalorder %v229, 0
        %vm232 = vcmp.eq.s32.totalorder %v228, 15
        %vm233 = vcmp.eq.s32.totalorder %v229, 15
        %v235 = vcombine.high %v223, %v223
        %236 = vrot.lane.b32.xlu0 %v235, 15
        %v237 = vpop.permute.xlu0 %236
        %239 = vrot.lane.b32.xlu0 %v223, 15
        %v240 = vpop.permute.xlu0 %239
        %vm241 = vcmask 121856
        %v242 = vsel %vm241, %v240, %v237
        %v245 = vsel %vm241, %v237, %v240
        %246 = vrot.lane.b32.xlu0 %v223, 127
        %v247 = vpop.permute.xlu0 %246
        %248 = vrot.lane.b32.xlu0 %v235, 127
        %v249 = vpop.permute.xlu0 %248
        %vm250 = vcmask 1039360
        %v251 = vsel %vm250, %v247, %v249
        %v255 = vsel %vm250, %v249, %v247
        %v256 = vsel %vm232, %v245, %v251
        %v257 = vsel %vm233, %v242, %v255
        %258 = vrot.lane.b32.xlu0 %v223, 113
        %v259 = vpop.permute.xlu0 %258
        %260 = vrot.lane.b32.xlu0 %v235, 113
        %v261 = vpop.permute.xlu0 %260
        %vm262 = vcmask 924672
        %v263 = vsel %vm262, %v259, %v261
        %v267 = vsel %vm262, %v261, %v259
        %268 = vrot.lane.b32.xlu0 %v235, 1
        %v269 = vpop.permute.xlu0 %268
        %271 = vrot.lane.b32.xlu0 %v223, 1
        %v272 = vpop.permute.xlu0 %271
        %vm273 = vcmask 7168
        %v274 = vsel %vm273, %v272, %v269
        %v277 = vsel %vm273, %v269, %v272
        %v278 = vsel %vm230, %v263, %v277
        %v279 = vsel %vm231, %v267, %v274
        %281 = vrot.lane.b32.xlu0 %v279, 16
        %v282 = vpop.permute.xlu0 %281
        %285 = vrot.lane.b32.xlu0 %v278, 16
        %v286 = vpop.permute.xlu0 %285
        %vm287 = vcmask 130048
        %v288 = vsel %vm287, %v286, %v282
        %v291 = vsel %vm287, %v282, %v286
        %293 = vset.pattern.permute.xlu0 0
        %294 = vperm.xlu0 %293, %v224
        %v295 = vpop.permute.xlu0 %294
        %v297 = vmul.f32 %v295, %v291
        %v298 = vmul.f32 %v295, %v288
        %v299 = vadd.f32 %v297, 0.0
        %v300 = vadd.f32 %v298, 0.0
        %301 = vrot.lane.b32.xlu0 %v235, 16
        %v302 = vpop.permute.xlu0 %301
        %304 = vrot.lane.b32.xlu0 %v223, 16
        %v305 = vpop.permute.xlu0 %304
        %v306 = vsel %vm287, %v305, %v302
        %v309 = vsel %vm287, %v302, %v305
        %310 = vset.pattern.permute.xlu0 1
        %311 = vperm.xlu0 %310, %v224
        %v312 = vpop.permute.xlu0 %311
        %v314 = vmul.f32 %v312, %v309
        %v315 = vmul.f32 %v312, %v306
        %v316 = vadd.f32 %v299, %v314
        %v317 = vadd.f32 %v300, %v315
        %319 = vrot.lane.b32.xlu0 %v257, 16
        %v320 = vpop.permute.xlu0 %319
        %323 = vrot.lane.b32.xlu0 %v256, 16
        %v324 = vpop.permute.xlu0 %323
        %v325 = vsel %vm287, %v324, %v320
        %v328 = vsel %vm287, %v320, %v324
        %329 = vset.pattern.permute.xlu0 2
        %330 = vperm.xlu0 %329, %v224
        %v331 = vpop.permute.xlu0 %330
        %v333 = vmul.f32 %v331, %v328
        %v334 = vmul.f32 %v331, %v325
        %v335 = vadd.f32 %v316, %v333
        %v336 = vadd.f32 %v317, %v334
        %337 = vset.pattern.permute.xlu0 3
        %338 = vperm.xlu0 %337, %v224
        %v339 = vpop.permute.xlu0 %338
        %v341 = vmul.f32 %v339, %v278
        %v342 = vmul.f32 %v339, %v279
        %v343 = vadd.f32 %v335, %v341
        %v344 = vadd.f32 %v336, %v342
        %345 = vset.pattern.permute.xlu0 4
        %346 = vperm.xlu0 %345, %v224
        %v347 = vpop.permute.xlu0 %346
        %v350 = vmul.f32 %v347, %v223
        %v351 = vmul.f32 %v347, %v235
        %v352 = vadd.f32 %v343, %v350
        %v353 = vadd.f32 %v344, %v351
        %354 = vset.pattern.permute.xlu0 5
        %355 = vperm.xlu0 %354, %v224
        %v356 = vpop.permute.xlu0 %355
        %v358 = vmul.f32 %v356, %v256
        %v359 = vmul.f32 %v356, %v257
        %v360 = vadd.f32 %v352, %v358
        %v361 = vadd.f32 %v353, %v359
        %362 = vrot.lane.b32.xlu0 %v278, 112
        %v363 = vpop.permute.xlu0 %362
        %364 = vrot.lane.b32.xlu0 %v279, 112
        %v365 = vpop.permute.xlu0 %364
        %vm366 = vcmask 916480
        %v367 = vsel %vm366, %v363, %v365
        %v371 = vsel %vm366, %v365, %v363
        %372 = vset.pattern.permute.xlu0 6
        %373 = vperm.xlu0 %372, %v224
        %v374 = vpop.permute.xlu0 %373
        %v376 = vmul.f32 %v374, %v367
        %v377 = vmul.f32 %v374, %v371
        %v378 = vadd.f32 %v360, %v376
        %v379 = vadd.f32 %v361, %v377
        %380 = vrot.lane.b32.xlu0 %v223, 112
        %v381 = vpop.permute.xlu0 %380
        %382 = vrot.lane.b32.xlu0 %v235, 112
        %v383 = vpop.permute.xlu0 %382
        %v384 = vsel %vm366, %v381, %v383
        %v388 = vsel %vm366, %v383, %v381
        %389 = vset.pattern.permute.xlu0 7
        %390 = vperm.xlu0 %389, %v224
        %v391 = vpop.permute.xlu0 %390
        %v393 = vmul.f32 %v391, %v384
        %v394 = vmul.f32 %v391, %v388
        %v395 = vadd.f32 %v378, %v393
        %v396 = vadd.f32 %v379, %v394
        %397 = vrot.lane.b32.xlu0 %v256, 112
        %v398 = vpop.permute.xlu0 %397
        %399 = vrot.lane.b32.xlu0 %v257, 112
        %v400 = vpop.permute.xlu0 %399
        %v401 = vsel %vm366, %v398, %v400
        %v405 = vsel %vm366, %v400, %v398
        %406 = vset.pattern.permute.xlu0 8
        %407 = vperm.xlu0 %406, %v224
        %v408 = vpop.permute.xlu0 %407
        %v410 = vmul.f32 %v408, %v401
        %v411 = vmul.f32 %v408, %v405
        %v412 = vadd.f32 %v395, %v410
        %v413 = vadd.f32 %v396, %v411
        %v414 = vld [vmem:[%s2] sm:$0xff]
        %vm415 = vcmask 31744
        %v417 = vsel %vm415, %v414, 0
        %vm419 = vcmask 1043456
        %v421 = vsel %vm419, %v412, 0
        %v424 = vsel %vm419, %v413, 0
        %426 = vmatprep.subr.mxu0 %v424
        %427 = vmatpush1.msra.mxu0 %v421
        %428 = vmatprep.subr.mxu0 0.0
        %429 = vmatpush1.msra.mxu0 0.0
        %430 = vmatprep.subr.mxu0 0.0
        %431 = vmatpush1.msra.mxu0 0.0
        %432 = vmatprep.subr.mxu0 0.0
        %433 = vmatpush1.msra.mxu0 0.0
        %434 = vmatprep.subr.mxu0 0.0
        %435 = vmatpush1.msra.mxu0 0.0
        %436 = vmatprep.subr.mxu0 0.0
        %437 = vmatpush1.msra.mxu0 0.0
        %438 = vmatprep.subr.mxu0 0.0
        %439 = vmatpush1.msra.mxu0 0.0
        %440 = vmatprep.subr.mxu0 0.0
        %441 = vmatpush1.msra.mxu0 0.0
        %442 = vmatprep.subr.mxu0 0.0
        %443 = vmatpush1.msra.mxu0 0.0
        %444 = vmatprep.subr.mxu0 0.0
        %445 = vmatpush1.msra.mxu0 0.0
        %446 = vmatprep.subr.mxu0 0.0
        %447 = vmatpush1.msra.mxu0 0.0
        %448 = vmatprep.subr.mxu0 0.0
        %449 = vmatpush1.msra.mxu0 0.0
        %450 = vmatprep.subr.mxu0 0.0
        %451 = vmatpush1.msra.mxu0 0.0
        %452 = vmatprep.subr.mxu0 0.0
        %453 = vmatpush1.msra.mxu0 0.0
        %454 = vmatprep.subr.mxu0 0.0
        %455 = vmatpush1.msra.mxu0 0.0
        %456 = vmatprep.subr.mxu0 0.0
        %457 = vmatpush1.msra.mxu0 0.0
        %458 = vmatprep.subr.mxu0 0.0
        %459 = vmatpush1.msra.mxu0 0.0
        %460 = vmatprep.subr.mxu0 0.0
        %461 = vmatpush1.msra.mxu0 0.0
        %462 = vmatprep.subr.mxu0 0.0
        %463 = vmatpush1.msra.mxu0 0.0
        %464 = vmatprep.subr.mxu0 0.0
        %465 = vmatpush1.msra.mxu0 0.0
        %466 = vmatprep.subr.mxu0 0.0
        %467 = vmatpush1.msra.mxu0 0.0
        %468 = vmatprep.subr.mxu0 0.0
        %469 = vmatpush1.msra.mxu0 0.0
        %470 = vmatprep.subr.mxu0 0.0
        %471 = vmatpush1.msra.mxu0 0.0
        %472 = vmatprep.subr.mxu0 0.0
        %473 = vmatpush1.msra.mxu0 0.0
        %474 = vmatprep.subr.mxu0 0.0
        %475 = vmatpush1.msra.mxu0 0.0
        %476 = vmatprep.subr.mxu0 0.0
        %477 = vmatpush1.msra.mxu0 0.0
        %478 = vmatprep.subr.mxu0 0.0
        %479 = vmatpush1.msra.mxu0 0.0
        %480 = vmatprep.subr.mxu0 0.0
        %481 = vmatpush1.msra.mxu0 0.0
        %482 = vmatprep.subr.mxu0 0.0
        %483 = vmatpush1.msra.mxu0 0.0
        %484 = vmatprep.subr.mxu0 0.0
        %485 = vmatpush1.msra.mxu0 0.0
        %486 = vmatprep.subr.mxu0 0.0
        %487 = vmatpush1.msra.mxu0 0.0
        %488 = vmatprep.subr.mxu0 0.0
        %489 = vmatpush1.msra.mxu0 0.0
        %490 = vmatprep.mubr.f32.mxu0 0.0
        %491 = vmatmul.mubr.f32.gmra.mrb[0].mxu0 %v417
        %v492 = vpop.f32.mrb[0].mxu0
        %v493 = vadd.f32 0.0, %v492
        %v494 = vpop.f32.mrb[0].mxu0
        %v495 = vadd.f32 0.0, %v494
        %496 = vdwg.mxu0
        %v497 = vld [vmem:[%s3] sm:$0xff]
        %v499 = vsel %vm415, %v497, 0
        %v501 = vsel %vm419, %v223, 0
        %v503 = vsel %vm419, %v235, 0
        %505 = vmatprep.subr.mxu0 %v503
        %506 = vmatpush1.msra.mxu0 %v501
        %507 = vmatprep.subr.mxu0 0.0
        %508 = vmatpush1.msra.mxu0 0.0
        %509 = vmatprep.subr.mxu0 0.0
        %510 = vmatpush1.msra.mxu0 0.0
        %511 = vmatprep.subr.mxu0 0.0
        %512 = vmatpush1.msra.mxu0 0.0
        %513 = vmatprep.subr.mxu0 0.0
        %514 = vmatpush1.msra.mxu0 0.0
        %515 = vmatprep.subr.mxu0 0.0
        %516 = vmatpush1.msra.mxu0 0.0
        %517 = vmatprep.subr.mxu0 0.0
        %518 = vmatpush1.msra.mxu0 0.0
        %519 = vmatprep.subr.mxu0 0.0
        %520 = vmatpush1.msra.mxu0 0.0
        %521 = vmatprep.subr.mxu0 0.0
        %522 = vmatpush1.msra.mxu0 0.0
        %523 = vmatprep.subr.mxu0 0.0
        %524 = vmatpush1.msra.mxu0 0.0
        %525 = vmatprep.subr.mxu0 0.0
        %526 = vmatpush1.msra.mxu0 0.0
        %527 = vmatprep.subr.mxu0 0.0
        %528 = vmatpush1.msra.mxu0 0.0
        %529 = vmatprep.subr.mxu0 0.0
        %530 = vmatpush1.msra.mxu0 0.0
        %531 = vmatprep.subr.mxu0 0.0
        %532 = vmatpush1.msra.mxu0 0.0
        %533 = vmatprep.subr.mxu0 0.0
        %534 = vmatpush1.msra.mxu0 0.0
        %535 = vmatprep.subr.mxu0 0.0
        %536 = vmatpush1.msra.mxu0 0.0
        %537 = vmatprep.subr.mxu0 0.0
        %538 = vmatpush1.msra.mxu0 0.0
        %539 = vmatprep.subr.mxu0 0.0
        %540 = vmatpush1.msra.mxu0 0.0
        %541 = vmatprep.subr.mxu0 0.0
        %542 = vmatpush1.msra.mxu0 0.0
        %543 = vmatprep.subr.mxu0 0.0
        %544 = vmatpush1.msra.mxu0 0.0
        %545 = vmatprep.subr.mxu0 0.0
        %546 = vmatpush1.msra.mxu0 0.0
        %547 = vmatprep.subr.mxu0 0.0
        %548 = vmatpush1.msra.mxu0 0.0
        %549 = vmatprep.subr.mxu0 0.0
        %550 = vmatpush1.msra.mxu0 0.0
        %551 = vmatprep.subr.mxu0 0.0
        %552 = vmatpush1.msra.mxu0 0.0
        %553 = vmatprep.subr.mxu0 0.0
        %554 = vmatpush1.msra.mxu0 0.0
        %555 = vmatprep.subr.mxu0 0.0
        %556 = vmatpush1.msra.mxu0 0.0
        %557 = vmatprep.subr.mxu0 0.0
        %558 = vmatpush1.msra.mxu0 0.0
        %559 = vmatprep.subr.mxu0 0.0
        %560 = vmatpush1.msra.mxu0 0.0
        %561 = vmatprep.subr.mxu0 0.0
        %562 = vmatpush1.msra.mxu0 0.0
        %563 = vmatprep.subr.mxu0 0.0
        %564 = vmatpush1.msra.mxu0 0.0
        %565 = vmatprep.subr.mxu0 0.0
        %566 = vmatpush1.msra.mxu0 0.0
        %567 = vmatprep.subr.mxu0 0.0
        %568 = vmatpush1.msra.mxu0 0.0
        %569 = vmatprep.mubr.f32.mxu0 0.0
        %570 = vmatmul.mubr.f32.gmra.mrb[0].mxu0 %v499
        %v571 = vpop.f32.mrb[0].mxu0
        %v572 = vadd.f32 0.0, %v571
        %v573 = vpop.f32.mrb[0].mxu0
        %v574 = vadd.f32 0.0, %v573
        %575 = vdwg.mxu0
        %v576 = vmax.f32 %v493, 0.0
        %v577 = vmax.f32 %v495, 0.0
        %v578 = vadd.f32 %v576, %v572
        %v579 = vadd.f32 %v577, %v574
        %v580 = vld [vmem:[%s4] sm:$0xff]
        %582 = vset.pattern.permute.xlu0 0
        %583 = vperm.xlu0 %582, %v580
        %v584 = vpop.permute.xlu0 %583
        %v586 = vadd.f32 %v578, %v584
        %v587 = vadd.f32 %v579, %v584
        %588 = vst [vmem:[%s217] sm:$0xff] %v586
        %589 = vst [vmem:[%s217 + $0x8] sm:$0xff] %v587
        %s590 = sand.u32 %s137, 1
        %s591 = scalar_lea.sflag [#allocation3], %s590
        %s592 = sand.u32 %s137, 1
        %s593 = smul.addr %s592, 16
        %s594 = scalar_lea.vmem [#allocation2], %s593
        // Predicated region
        $region41: #{tpu_custom_call.1} parent=39 // pred_check
          %p595 = pneg %p147
        $region42: #{tpu_custom_call.1} parent=39 // pred_check_branch
          %597 = sbr.rel (%p595) target = $region44
        $region43: #{tpu_custom_call.1} parent=39 // pred_region
          %s599 = ssub.s32 256, 256
          %600 = vsyncadd %s591, %s599
          %s601 = smul.addr %s19, 2
          %s602 = smul.addr %s601, 128
          %s603 = scalar_lea.hbm %s5, %s602
          %s605 = sshll.u32 %s594, 4
          %s606 = int_to_ptr.vmem [resolvable:$true] %s605
          %608 = dma.vmem_to_hbm [thread:$0]  %s606, 256, %s603, %s591
        $region44: #{tpu_custom_call.1} parent=39 // pred_fallthru
          _
      $region40: #{tpu_custom_call.1} parent=5 // pred_fallthru
        _
      %p609 = scmp.le.s32.totalorder 2, %s14
      // Predicated region
      $region45: #{tpu_custom_call.1} parent=5 // pred_check
        %p610 = pneg %p609
      $region46: #{tpu_custom_call.1} parent=5 // pred_check_branch
        %612 = sbr.rel (%p610) target = $region48
      $region47: #{tpu_custom_call.1} parent=5 // pred_region
        %s613 = ssub.s32 %s14, 2
        // Predicated region
        $region49: #{tpu_custom_call.1} parent=47 // pred_check
          %p614 = pneg %p153
        $region50: #{tpu_custom_call.1} parent=47 // pred_check_branch
          %616 = sbr.rel (%p614) target = $region52
        $region51: #{tpu_custom_call.1} parent=47 // pred_region
          %s617 = sand.u32 %s138, 1
          %s618 = scalar_lea.sflag [#allocation3], %s617
          %s619 = sand.u32 %s138, 1
          %s620 = smul.addr %s619, 16
          %s621 = scalar_lea.vmem [#allocation2], %s620
          %622 = dma.done %s618, 256
        $region52: #{tpu_custom_call.1} parent=47 // pred_fallthru
          _
      $region48: #{tpu_custom_call.1} parent=5 // pred_fallthru
        _
    $region6: #{tpu_custom_call.1} parent=1 // loop_footer
      %s18 = sadd.s32 1, %s14
    $region7: #{tpu_custom_call.1} parent=1 // loop_footer_branch
      %13 = sbr.rel target = $region3
    $region8: #{tpu_custom_call.1} parent=1 // loop_exit
      _
    %623 = vsyncpa [#allocation3], 1
    %s624 = scalar_lea.sflag [#allocation3], 1
    %625 = vsyncpa %s624, 1

</llo_original>
